<compile_context>
chip_gen: v6e
topology: v6e:2x2x1
jax: 0.10.0
libtpu: 0.0.40
codegen_flags: <defaults>
</compile_context>

<pallas_src>
import jax
import jax.numpy as jnp
import numpy as np
from jax.experimental import pallas as pl
from jax.experimental.pallas import tpu as pltpu


def _make_time_encode_kernel(G, D, use_bias):
    def kernel(*refs):
        if use_bias:
            t_ref, w_ref, b_ref, o_ref = refs
        else:
            t_ref, w_ref, o_ref = refs
            b_ref = None

        t = t_ref[...]            # (TM, G)  timestamps, G packed per output row
        w = w_ref[...]            # (1, L)   frequencies, tiled to L = G*D lanes
        tm = t.shape[0]

        if G == 1:
            # (TM, 1) * (1, L) -> (TM, L) pure VPU broadcast, no relayout.
            phase = t * w
        else:
            # Expand each of the G t values to D consecutive lanes:
            # (TM, G) -> (TM, G*D). Lane broadcast + minor-dim concat (XLU),
            # free filler under the HBM-write roofline.
            parts = [jnp.broadcast_to(t[:, g:g + 1], (tm, D)) for g in range(G)]
            t_exp = jnp.concatenate(parts, axis=-1)     # (TM, L)
            phase = t_exp * w

        if b_ref is not None:
            phase = phase + b_ref[...]

        o_ref[...] = jnp.cos(phase).astype(o_ref.dtype)

    return kernel


def time_encode(t, w, b=None, *, block_rows=1024, out_dtype=jnp.float32):
    """t: [B, S]; w: [D]; b: [D] or None (TimeEncode bias is fixed zero).

    Returns [B, S, D] in `out_dtype` (use jnp.bfloat16 to halve HBM writes if
    downstream tolerates it; default float32 matches the PyTorch module).
    """
    B, S = t.shape
    D = int(w.shape[0])
    N = B * S

    # Lane packing factor: G consecutive output rows share one 128-lane row.
    if D % 128 == 0:
        G = 1
    elif 128 % D == 0:
        G = 128 // D
    else:
        G = 1  # TODO(synk): D not aligned to 128 lanes -> masked stores fallback.
    L = G * D

    t_flat = t.reshape(N).astype(jnp.float32)

    rows = pl.cdiv(N, G)
    if rows >= block_rows:
        tm = block_rows                       # multiple of 8 sublanes
        rows_pad = pl.cdiv(rows, tm) * tm
    else:
        tm = rows                             # block == full array dim -> legal
        rows_pad = rows

    n_pad = rows_pad * G
    if n_pad != N:
        t_flat = jnp.pad(t_flat, (0, n_pad - N))
    t_packed = t_flat.reshape(rows_pad, G)

    w_row = jnp.tile(w.astype(jnp.float32).reshape(1, D), (1, G))   # (1, L)

    args = [t_packed, w_row]
    in_specs = [
        pl.BlockSpec((tm, G), lambda i: (i, 0)),
        pl.BlockSpec((1, L), lambda i: (0, 0)),
    ]
    use_bias = b is not None
    if use_bias:
        b_row = jnp.tile(b.astype(jnp.float32).reshape(1, D), (1, G))
        args.append(b_row)
        in_specs.append(pl.BlockSpec((1, L), lambda i: (0, 0)))

    out_packed = pl.pallas_call(
        _make_time_encode_kernel(G, D, use_bias),
        out_shape=jax.ShapeDtypeStruct((rows_pad, L), out_dtype),
        grid_spec=pltpu.PrefetchScalarGridSpec(
            num_scalar_prefetch=0,
            grid=(rows_pad // tm,),
            in_specs=in_specs,
            out_specs=pl.BlockSpec((tm, L), lambda i: (i, 0)),
        ),
        compiler_params=pltpu.CompilerParams(
            dimension_semantics=("parallel",),        # shards across TCs on v7x
            vmem_limit_bytes=32 * 1024 * 1024,        # tiles ~<=1 MiB, safe on 64 MiB v7x
        ),
    )(*args)

    out = out_packed.reshape(rows_pad * G, D)
    if n_pad != N:
        out = out[:N]
    return out.reshape(B, S, D)


if __name__ == "__main__":
    B, S, DIM = 2, 8, 32

    # Deterministic parameters, matching reset_parameters():
    #   weight = 1 / 10 ** linspace(0, 9, dim), bias = 0 (folded out -> b=None).
    w_np = (1.0 / 10 ** np.linspace(0, 9, DIM, dtype=np.float32)).astype(np.float32)
    w = jnp.asarray(w_np)

    key = jax.random.PRNGKey(0)
    t = jax.random.uniform(key, (B, S), dtype=jnp.float32, minval=0.0, maxval=100.0)

    out = time_encode(t, w, b=None)
    out = jax.block_until_ready(out)

    # Reference check in plain JAX (bias is zero in TimeEncode).
    ref = jnp.cos(t[:, :, None] * w[None, None, :])
    assert out.shape == (B, S, DIM), out.shape
    np.testing.assert_allclose(np.asarray(out), np.asarray(ref), rtol=1e-6, atol=1e-6)

    print("KERNEL_OK")
</pallas_src>

<mosaic_0001>
module attributes {stable_mosaic.version = 11 : i64} {
  func.func @kernel(%arg0: i32, %arg1: memref<4x4xf32, #tpu.memory_space<vmem>>, %arg2: memref<1x128xf32, #tpu.memory_space<vmem>>, %arg3: memref<4x128xf32, #tpu.memory_space<vmem>>) attributes {dimension_semantics = [#tpu.dimension_semantics<parallel>], iteration_bounds = array<i64: 1>, scalar_prefetch = 0 : i64, scratch_operands = 0 : i64, tpu.core_type = #tpu.core_type<tc>, window_params = [{transform_indices = @transform_0, window_bounds = array<i64: 4, 4>}, {pipeline_mode = #tpu.pipeline_mode<synchronous>, transform_indices = @transform_1, window_bounds = array<i64: 1, 128>}, {transform_indices = @transform_2, window_bounds = array<i64: 4, 128>}]} {
    %c0 = arith.constant 0 : index
    %c0_0 = arith.constant 0 : index
    %0 = vector.load %arg1[%c0, %c0_0] : memref<4x4xf32, #tpu.memory_space<vmem>>, vector<4x4xf32>
    %c0_1 = arith.constant 0 : index
    %c0_2 = arith.constant 0 : index
    %1 = vector.load %arg2[%c0_1, %c0_2] : memref<1x128xf32, #tpu.memory_space<vmem>>, vector<1x128xf32>
    %2 = vector.extract_strided_slice %0 {offsets = [0, 0], sizes = [4, 1], strides = [1, 1]} : vector<4x4xf32> to vector<4x1xf32>
    %3 = vector.shape_cast %2 : vector<4x1xf32> to vector<4x1xf32>
    %4 = vector.broadcast %3 : vector<4x1xf32> to vector<4x32xf32>
    %5 = vector.extract_strided_slice %0 {offsets = [0, 1], sizes = [4, 1], strides = [1, 1]} : vector<4x4xf32> to vector<4x1xf32>
    %6 = vector.shape_cast %5 : vector<4x1xf32> to vector<4x1xf32>
    %7 = vector.broadcast %6 : vector<4x1xf32> to vector<4x32xf32>
    %8 = vector.extract_strided_slice %0 {offsets = [0, 2], sizes = [4, 1], strides = [1, 1]} : vector<4x4xf32> to vector<4x1xf32>
    %9 = vector.shape_cast %8 : vector<4x1xf32> to vector<4x1xf32>
    %10 = vector.broadcast %9 : vector<4x1xf32> to vector<4x32xf32>
    %11 = vector.extract_strided_slice %0 {offsets = [0, 3], sizes = [4, 1], strides = [1, 1]} : vector<4x4xf32> to vector<4x1xf32>
    %12 = vector.shape_cast %11 : vector<4x1xf32> to vector<4x1xf32>
    %13 = vector.broadcast %12 : vector<4x1xf32> to vector<4x32xf32>
    %14 = tpu.concatenate %4, %7, %10, %13 in 1 : vector<4x32xf32>, vector<4x32xf32>, vector<4x32xf32>, vector<4x32xf32> -> vector<4x128xf32>
    %15 = vector.broadcast %1 : vector<1x128xf32> to vector<4x128xf32>
    %16 = arith.mulf %14, %15 : vector<4x128xf32>
    %17 = math.cos %16 : vector<4x128xf32>
    %c0_3 = arith.constant 0 : index
    %c0_4 = arith.constant 0 : index
    %18 = vector.load %arg3[%c0_3, %c0_4] : memref<4x128xf32, #tpu.memory_space<vmem>>, vector<4x128xf32>
    tpu.vector_store %arg3[%c0_3, %c0_4], %17 {strides = array<i32>} : memref<4x128xf32, #tpu.memory_space<vmem>>, vector<4x128xf32>,
    return
  }
  func.func @transform_0(%arg0: i32) -> (i32, i32) {
    %c0_i32 = arith.constant 0 : i32
    %c0_i32_0 = arith.constant 0 : i32
    return %arg0, %c0_i32 : i32, i32
  }
  func.func @transform_1(%arg0: i32) -> (i32, i32) {
    %c0_i32 = arith.constant 0 : i32
    %c0_i32_0 = arith.constant 0 : i32
    %c0_i32_1 = arith.constant 0 : i32
    return %c0_i32, %c0_i32_0 : i32, i32
  }
  func.func @transform_2(%arg0: i32) -> (i32, i32) {
    %c0_i32 = arith.constant 0 : i32
    %c0_i32_0 = arith.constant 0 : i32
    return %arg0, %c0_i32 : i32, i32
  }
}

</mosaic_0001>

<llo_original>
// kernel: tpu_custom_call.1
$region0: #{tpu_custom_call.1}
  #allocation0 [shape = 'u32[]', space=smem, size = 0x4, offset = 0x4, fixed_abs, tag = 'smem constant byte address 0x4 - core index']
  #allocation1 [shape = 'u32[144,128]{1,0:T(1,128)}', space=vmem, size = 0x12000, scoped, tag = 'internal scratch']
  %s0 = inlined_call_operand.hbm [shape: f32[4,4], index: 0, kind: input, shape index: {}]
  %s1 = inlined_call_operand.vmem [shape: f32[1,128], index: 1, kind: input, shape index: {}]
  %s2 = inlined_call_operand.hbm [shape: f32[4,128], index: 2, kind: output, shape index: {}]
  %s3 = sld [smem:[#allocation0]]
  $region22: #{tpu_custom_call.1} parent=0
    _
  %s5 = ssub.s32 1, %s3
  %s6 = scalar_select 0, %s5, %s3
  $region1: #{tpu_custom_call.1} parent=0
    #allocation2 [shape = 'u8[2048]{0}', space=vmem, size = 0x800, scoped, tag = 'input window, operand 0, single buffered']
    #allocation3 [shape = 's32[1]{0}', space=sflag, size = 0x4, scoped, tag = 'scoped memory for tpu_custom_call.1']
    #allocation4 [shape = 's32[1]{0}', space=sflag, size = 0x4, scoped, tag = 'scoped memory for tpu_custom_call.1']
    #allocation5 [shape = 'u8[2048]{0}', space=vmem, size = 0x800, scoped, tag = 'output window, operand 0, single buffered']
    %7 = vsyncpa [#allocation3], 0
    %8 = vsyncpa [#allocation4], 0
    // Predicated region
    $region2: #{tpu_custom_call.1} parent=1 // pred_check
      _
    $region3: #{tpu_custom_call.1} parent=1 // pred_check_branch
      %10 = sbr.rel (0) target = $region5
    $region4: #{tpu_custom_call.1} parent=1 // pred_region
      %s12 = ssub.s32 64, 64
      %13 = vsyncadd [#allocation3], %s12
      %s15 = sshll.u32 [#allocation2], 4
      %s16 = int_to_ptr.vmem [resolvable:$true] %s15
      %18 = dma.hbm_to_vmem [thread:$0]  %s0, 64, %s16, [#allocation3]
    $region5: #{tpu_custom_call.1} parent=1 // pred_fallthru
      _
    // Predicated region
    $region6: #{tpu_custom_call.1} parent=1 // pred_check
      _
    $region7: #{tpu_custom_call.1} parent=1 // pred_check_branch
      %20 = sbr.rel (0) target = $region9
    $region8: #{tpu_custom_call.1} parent=1 // pred_region
      _
    $region9: #{tpu_custom_call.1} parent=1 // pred_fallthru
      _
    // Predicated region
    $region10: #{tpu_custom_call.1} parent=1 // pred_check
      _
    $region11: #{tpu_custom_call.1} parent=1 // pred_check_branch
      %22 = sbr.rel (0) target = $region13
    $region12: #{tpu_custom_call.1} parent=1 // pred_region
      %23 = dma.done [#allocation3], 64
    $region13: #{tpu_custom_call.1} parent=1 // pred_fallthru
      _
    %v24 = vld [vmem:[#allocation2] sm:$0xf]
    %v25 = vld [vmem:[%s1] sm:$0x1]
    %27 = vset.pattern.permute.xlu0 0
    %28 = vperm.xlu0 %27, %v24
    %v29 = vpop.permute.xlu0 %28
    %31 = vset.pattern.permute.xlu0 1
    %32 = vperm.xlu0 %31, %v24
    %v33 = vpop.permute.xlu0 %32
    %35 = vset.pattern.permute.xlu0 2
    %36 = vperm.xlu0 %35, %v24
    %v37 = vpop.permute.xlu0 %36
    %39 = vset.pattern.permute.xlu0 3
    %40 = vperm.xlu0 %39, %v24
    %v41 = vpop.permute.xlu0 %40
    %vm43 = vcmask 261120
    %v44 = vsel %vm43, %v29, %v33
    %vm45 = vcmask 523264
    %v46 = vsel %vm45, %v44, %v37
    %vm47 = vcmask 785408
    %v48 = vsel %vm47, %v46, %v41
    %v50 = vlaneseq
    %v51 = vshrl.u32 %v50, 7
    %v52 = vsub.s32 0, %v51
    %v53 = vrot.slane %v25, %v52
    %v55 = vmul.f32 %v48, %v53
    %v56 = vand.u32 2147483647, %v55
    %vm57 = vcmp.le.f32.partialorder %v56, 0.7853982
    %vm58 = vcmp.lt.s32.totalorder %v55, 0
    %v59 = vand.u32 %v55, 2139095040
    %v60 = vshrl.u32 %v59, 23
    %v61 = vsub.s32 %v60, 127
    %v62 = vand.u32 2147483647, %v55
    %v63 = vand.u32 %v62, 8388607
    %v64 = vor.u32 %v63, 8388608
    %v65 = vsub.s32 0, %v64
    %v66 = vadd.s32 %v61, 1
    %vm67 = vcmp.gt.s32.totalorder %v66, 0
    %v68 = vsel %vm67, %v66, 0
    %v69 = vshrl.u32 %v68, 5
    %v70 = vand.u32 %v68, 31
    %v71 = vsub.s32 32, %v70
    %v72 = vshrl.u32 683565275, %v71
    %v73 = vshll.u32 683565275, %v70
    %v74 = vshrl.u32 2475754826, %v71
    %v75 = vor.u32 %v73, %v74
    %v76 = vshll.u32 2475754826, %v70
    %v77 = vshrl.u32 2131351028, %v71
    %v78 = vor.u32 %v76, %v77
    %v79 = vshll.u32 2131351028, %v70
    %v80 = vshrl.u32 2102212464, %v71
    %v81 = vor.u32 %v79, %v80
    %v82 = vshll.u32 2102212464, %v70
    %v83 = vshrl.u32 920167782, %v71
    %v84 = vor.u32 %v82, %v83
    %v85 = vshll.u32 920167782, %v70
    %v86 = vshrl.u32 1326507024, %v71
    %v87 = vor.u32 %v85, %v86
    %vm88 = vcmp.lt.s32.totalorder %v69, 1
    %vm89 = vcmp.lt.s32.totalorder %v69, 2
    %vm90 = vcmp.lt.s32.totalorder %v69, 3
    %vm91 = vcmp.lt.s32.totalorder %v69, 4
    %v92 = vsel %vm88, %v72, %v75
    %v93 = vsel %vm91, %v81, 2102212464
    %v94 = vsel %vm90, %v78, %v93
    %v95 = vsel %vm89, %v92, %v94
    %v96 = vsel %vm88, %v75, %v78
    %v97 = vsel %vm91, %v84, 920167782
    %v98 = vsel %vm90, %v81, %v97
    %v99 = vsel %vm89, %v96, %v98
    %v100 = vsel %vm88, %v78, %v81
    %v101 = vsel %vm91, %v87, 1326507024
    %v102 = vsel %vm90, %v84, %v101
    %v103 = vsel %vm89, %v100, %v102
    %v104 = vshll.u32 %v64, 8
    %v105 = vmul.u32.u64.compose %v104, %v103
    %v106 = vextract.low.u32 %v105
    %v107 = vextract.high.u32 %v105
    %v108 = vmul.u32.u64.compose %v104, %v99
    %v109 = vextract.low.u32 %v108
    %v110 = vextract.high.u32 %v108
    %v111 = vmul.u32 %v104, %v95
    %v112 = vadd.s32 %v107, %v109
    %vm113 = vc.u32 %v107, %v109
    %v114 = vadd.s32 %v110, 1
    %v115 = vsel %vm113, %v114, %v110
    %v116 = vadd.s32 %v111, %v115
    %v117 = vadd.s32 %v116, 536870912
    %v118 = vshrl.u32 %v117, 30
    %v119 = vshll.u32 %v118, 30
    %v120 = vsub.s32 %v116, %v119
    %vm121 = vcmp.lt.s32.totalorder %v120, 0
    %v122 = vsub.s32 0, %v120
    %v123 = vsel %vm121, %v122, %v120
    %v124 = vclz %v123
    %v125 = vsub.s32 %v124, 2
    %vm126 = vcmp.gt.s32.totalorder 0, %v125
    %v127 = vsel %vm126, 0, %v125
    %v128 = vsub.s32 32, %v127
    %v129 = vshll.u32 %v120, %v127
    %v130 = vshrl.u32 %v112, %v128
    %v131 = vor.u32 %v129, %v130
    %v132 = vsub.s32 4294967266, %v127
    %v133 = vadd.s32 %v132, 127
    %v134 = vshll.u32 %v133, 23
    %v135 = vor.u32 4788187, %v134
    %v136 = vand.u32 2147483647, %v135
    %v138 = vcvt.s32.f32 %v131
    %v139 = vmul.f32 %v138, %v136
    %v140 = vxor.u32 %v139, 2147483648
    %v141 = vsel %vm58, %v140, %v139
    %v142 = vsub.s32 4, %v118
    %v143 = vsel %vm58, %v142, %v118
    %v144 = vsel %vm57, %v55, %v141
    %v145 = vsel %vm57, 0, %v143
    %v146 = vcosq.f32.pop %v144
    %v147 = vsinq.f32.pop %v144
    %vm148 = vweird.f32 %v55
    %v149 = vand.u32 %v145, 3
    %vm150 = vcmp.lt.s32.totalorder %v149, 2
    %vm151 = vcmp.eq.s32.totalorder %v149, 0
    %v152 = vxor.u32 %v147, 2147483648
    %v153 = vsel %vm151, %v146, %v152
    %vm154 = vcmp.eq.s32.totalorder %v149, 2
    %v155 = vxor.u32 %v146, 2147483648
    %v156 = vsel %vm154, %v155, %v147
    %v157 = vsel %vm150, %v153, %v156
    %v158 = vsel %vm148, nan, %v157
    %159 = vst [vmem:[#allocation5] sm:$0xf] %v158
    // Predicated region
    $region14: #{tpu_custom_call.1} parent=1 // pred_check
      _
    $region15: #{tpu_custom_call.1} parent=1 // pred_check_branch
      %161 = sbr.rel (0) target = $region17
    $region16: #{tpu_custom_call.1} parent=1 // pred_region
      %s163 = ssub.s32 64, 64
      %164 = vsyncadd [#allocation4], %s163
      %s166 = sshll.u32 [#allocation5], 4
      %s167 = int_to_ptr.vmem [resolvable:$true] %s166
      %169 = dma.vmem_to_hbm [thread:$0]  %s167, 64, %s2, [#allocation4]
    $region17: #{tpu_custom_call.1} parent=1 // pred_fallthru
      _
    // Predicated region
    $region18: #{tpu_custom_call.1} parent=1 // pred_check
      _
    $region19: #{tpu_custom_call.1} parent=1 // pred_check_branch
      %171 = sbr.rel (0) target = $region21
    $region20: #{tpu_custom_call.1} parent=1 // pred_region
      %172 = dma.done [#allocation4], 64
    $region21: #{tpu_custom_call.1} parent=1 // pred_fallthru
      _
    %173 = vsyncpa [#allocation3], 1
    %174 = vsyncpa [#allocation4], 1

</llo_original>
